<compile_context>
chip_gen: v7x
topology: tpu7x:2x2x1
jax: 0.10.0
libtpu: 0.0.40
codegen_flags: <defaults>
</compile_context>

<pallas_src>
import jax
import jax.numpy as jnp
from jax.experimental import pallas as pl
from jax.experimental.pallas import tpu as pltpu


def _round_up(n, m):
    return ((n + m - 1) // m) * m


_HW = None


def _tpu_params():
    """Per-generation knobs, queried once (conservative fallback)."""
    global _HW
    if _HW is None:
        vmem = 64 << 20                      # conservative default (v7x per-TC VMEM)
        try:
            info = pltpu.get_tpu_info()
            vmem = int(getattr(info, "vmem_capacity_bytes", vmem)) or vmem
        except Exception:                    # not a TPU / API unavailable: keep default
            pass
        # Heuristic: 64 MiB VMEM => v7x-class chip (2 TensorCores);
        #            128 MiB     => v5e/v6e (single TensorCore).
        _HW = {"vmem": vmem, "two_cores": vmem <= (64 << 20)}
    return _HW


def _vmem_limit(need_bytes, vmem_cap):
    """Tight-but-safe scoped-VMEM limit: 25% headroom, floor 16 MiB, capped
    below the generation's physical VMEM (review: no flat 48 MiB)."""
    limit = max(need_bytes * 5 // 4 + (2 << 20), 16 << 20)
    return int(min(limit, max(vmem_cap - (8 << 20), 16 << 20)))


# ----------------------------------------------------------------------------
# Kernel 1: generic residual add  out = fx + x   (HBM-bandwidth bound)
# ----------------------------------------------------------------------------
def _residual_add_kernel(fx_ref, x_ref, o_ref):
    o_ref[...] = fx_ref[...] + x_ref[...]


def residual_add(fx, x, *, block_bytes=None):
    """Elementwise residual add on a lane-dense (rows, lane) view.

    lane = widest multiple of 128 dividing numel -> the reshape is a free
    view, no pad/slice HBM copies; the ragged last row block is handled by the
    cdiv grid's masked loads/stores.  `fx`'s buffer is donated to the output.
    """
    assert fx.shape == x.shape and fx.dtype == x.dtype
    orig_shape, dtype = x.shape, x.dtype
    total = int(x.size)
    if total == 0:
        return x
    itemsize = jnp.dtype(dtype).itemsize
    sub = max(8, 32 // itemsize)             # sublane alignment for this dtype
    hw = _tpu_params()

    lane = next((c for c in (2048, 1024, 512, 384, 256, 128) if total % c == 0), None)
    padded = lane is None
    if padded:
        # TODO(synk): rare ragged case (numel % 128 != 0) keeps the old
        # pad+slice path — extra HBM copies, correctness only.
        lane = 128
        rows = pl.cdiv(total, lane)
        pad = rows * lane - total
        fx2 = jnp.pad(fx.reshape(-1), (0, pad)).reshape(rows, lane)
        x2 = jnp.pad(x.reshape(-1), (0, pad)).reshape(rows, lane)
    else:
        rows = total // lane
        fx2 = fx.reshape(rows, lane)
        x2 = x.reshape(rows, lane)

    # Row-tile size: ~8 MiB/operand block on 128 MiB-VMEM parts (v5e/v6e),
    # ~4 MiB on 64 MiB-VMEM parts (v7x).  Only force a >=2-block split on
    # 2-TC parts; on single-TC chips it just doubles per-step overhead.
    if block_bytes is None:
        block_bytes = (4 << 20) if hw["two_cores"] else (8 << 20)
    if rows <= sub:
        tm = rows                                        # single full-extent block
    else:
        tm = max(sub, (block_bytes // (lane * itemsize)) // sub * sub)
        if hw["two_cores"]:
            tm = min(tm, max(sub, _round_up(pl.cdiv(rows, 2), sub)))
        tm = min(tm, _round_up(rows, sub))
    grid_m = pl.cdiv(rows, tm)

    need = 3 * 2 * tm * lane * itemsize                  # 3 operands, double-buffered
    out = pl.pallas_call(
        _residual_add_kernel,
        out_shape=jax.ShapeDtypeStruct((rows, lane), dtype),
        grid_spec=pltpu.PrefetchScalarGridSpec(
            num_scalar_prefetch=0,
            grid=(grid_m,),
            in_specs=[
                pl.BlockSpec((tm, lane), lambda i: (i, 0)),
                pl.BlockSpec((tm, lane), lambda i: (i, 0)),
            ],
            out_specs=pl.BlockSpec((tm, lane), lambda i: (i, 0)),
        ),
        compiler_params=pltpu.CompilerParams(
            dimension_semantics=("parallel",),
            vmem_limit_bytes=_vmem_limit(need, hw["vmem"]),
        ),
        cost_estimate=pl.CostEstimate(
            flops=total, transcendentals=0, bytes_accessed=3 * total * itemsize),
        # fx (fn's output inside Residual) is donated; if the caller still
        # holds fx, XLA inserts a defensive copy (safe, just no memory saving).
        input_output_aliases={0: 0},
    )(fx2, x2)

    if padded:
        return out.reshape(-1)[:total].reshape(orig_shape)
    return out.reshape(orig_shape)


# ----------------------------------------------------------------------------
# Kernel 2: fused Residual(Linear):  out = x @ W + b + x   (MXU + VPU)
# ----------------------------------------------------------------------------
def _residual_linear_kernel(x_ref, w_ref, b_ref, o_ref):
    x = x_ref[...]
    # bf16 MXU operands (2x throughput on every generation), f32 accumulation.
    y = jnp.dot(x.astype(jnp.bfloat16), w_ref[...],
                preferred_element_type=jnp.float32)
    y = y + b_ref[...] + x.astype(jnp.float32)           # bias + residual in f32
    o_ref[...] = y.astype(o_ref.dtype)


def _residual_linear_ktiled_kernel(x_ref, w_ref, b_ref, xres_ref, o_ref, acc_ref):
    k = pl.program_id(1)

    @pl.when(k == 0)
    def _():
        acc_ref[...] = jnp.zeros_like(acc_ref)

    acc_ref[...] += jnp.dot(x_ref[...].astype(jnp.bfloat16), w_ref[...],
                            preferred_element_type=jnp.float32)

    @pl.when(k == pl.num_programs(1) - 1)
    def _():
        y = acc_ref[...] + b_ref[...] + xres_ref[...].astype(jnp.float32)
        o_ref[...] = y.astype(o_ref.dtype)


def residual_linear(x, w, b, *, tm=None, tk=None, out_dtype=None,
                    weight_resident_max_bytes=None):
    """Fused fn(x) + x where fn is Linear(D, D).

    Weight-resident path (small/medium D): whole bf16 weight stays in VMEM,
    single-buffered (its block index never changes).  Large weights switch to
    a K-tiled grid with an f32 accumulator scratch so weight DMA pipelines
    under the MXU (v7x's 64 MiB VMEM).  D must be a multiple of 128 for the
    MXU path (lane-dense output stores); otherwise fall back to XLA matmul +
    Pallas residual add.
    """
    orig_shape, dtype = x.shape, x.dtype
    d = orig_shape[-1]
    assert w.shape == (d, d) and b.shape == (d,)
    out_dtype = dtype if out_dtype is None else out_dtype
    hw = _tpu_params()

    x2 = x.reshape(-1, d)
    m = x2.shape[0]
    itemsize = jnp.dtype(dtype).itemsize
    out_itemsize = jnp.dtype(out_dtype).itemsize
    sub = max(8, 32 // itemsize)

    if d % 128 != 0:
        # Lane-sparse output (masked vst) + mostly-idle MXU: skip the fused
        # MXU path entirely (review), keep only the residual add in Pallas.
        y = (jnp.dot(x2, w) + b).reshape(orig_shape).astype(dtype)
        return residual_add(y, x).astype(out_dtype)

    # Per-generation row tile: tm=512 on 128 MiB-VMEM parts, 256 on v7x.
    if tm is None:
        tm = 256 if hw["two_cores"] else 512
    if m <= sub:
        tm_eff = m                                       # single full-extent block
    else:
        tm_eff = min(_round_up(tm, sub), _round_up(m, sub))
        if hw["two_cores"]:
            tm_eff = min(tm_eff, max(sub, _round_up(pl.cdiv(m, 2), sub)))
    grid_m = pl.cdiv(m, tm_eff)                          # ragged tail handled by Pallas

    w_bf = w.astype(jnp.bfloat16)                        # halves weight HBM + VMEM
    b2 = b.reshape(1, d).astype(jnp.float32)
    w_bytes = d * d * 2

    cost = pl.CostEstimate(
        flops=2 * m * d * d,
        transcendentals=0,
        bytes_accessed=m * d * itemsize + w_bytes + d * 4 + m * d * out_itemsize)

    if weight_resident_max_bytes is None:
        # Keep the whole weight resident only while it uses <~1/4 of VMEM.
        weight_resident_max_bytes = min(16 << 20, hw["vmem"] // 4)

    if w_bytes <= weight_resident_max_bytes:
        # -------------------- weight-resident path --------------------------
        need = (2 * tm_eff * d * itemsize                # x blocks (double-buffered)
                + 2 * tm_eff * d * out_itemsize          # out blocks
                + 2 * w_bytes                            # conservative: 2 weight bufs
                + 2 * d * 4)                             # bias
        params = pltpu.CompilerParams(
            dimension_semantics=("parallel",),
            vmem_limit_bytes=_vmem_limit(need, hw["vmem"]))

        def call(w_spec):
            return pl.pallas_call(
                _residual_linear_kernel,
                out_shape=jax.ShapeDtypeStruct((m, d), out_dtype),
                grid_spec=pltpu.PrefetchScalarGridSpec(
                    num_scalar_prefetch=0,
                    grid=(grid_m,),
                    in_specs=[
                        pl.BlockSpec((tm_eff, d), lambda i: (i, 0)),
                        w_spec,
                        pl.BlockSpec((1, d), lambda i: (0, 0)),
                    ],
                    out_specs=pl.BlockSpec((tm_eff, d), lambda i: (i, 0)),
                ),
                compiler_params=params,
                cost_estimate=cost,
            )(x2, w_bf, b2)

        try:
            # Weight block index never changes -> single-buffer it.
            out = call(pl.BlockSpec((d, d), lambda i: (0, 0),
                                    pipeline_mode=pl.Buffered(1)))
        except (pltpu.LoweringException, NotImplementedError, TypeError, ValueError):
            # Narrowed from bare `except` (review): only API/lowering rejection
            # of Buffered(1) falls back to the default double-buffered weight.
            out = call(pl.BlockSpec((d, d), lambda i: (0, 0)))
        return out.reshape(orig_shape)

    # -------------------- K-tiled path (large weights, e.g. v7x) -------------
    if tk is None:
        tk = 512 if d % 512 == 0 else (256 if d % 256 == 0 else 128)
    assert d % tk == 0 and tk % 128 == 0
    grid_k = d // tk

    need = (2 * tm_eff * tk * itemsize                   # x matmul slabs
            + 2 * tk * d * 2                             # bf16 weight slabs
            + 2 * tm_eff * d * itemsize                  # x residual slabs
            + 2 * tm_eff * d * out_itemsize              # out slabs
            + tm_eff * d * 4                             # f32 accumulator
            + 2 * d * 4)
    params = pltpu.CompilerParams(
        dimension_semantics=("parallel", "arbitrary"),
        vmem_limit_bytes=_vmem_limit(need, hw["vmem"]))

    out = pl.pallas_call(
        _residual_linear_ktiled_kernel,
        out_shape=jax.ShapeDtypeStruct((m, d), out_dtype),
        grid_spec=pltpu.PrefetchScalarGridSpec(
            num_scalar_prefetch=0,
            grid=(grid_m, grid_k),
            in_specs=[
                pl.BlockSpec((tm_eff, tk), lambda i, k: (i, k)),   # x (matmul K-slab)
                pl.BlockSpec((tk, d), lambda i, k: (k, 0)),        # W K-slab
                pl.BlockSpec((1, d), lambda i, k: (0, 0)),         # bias
                pl.BlockSpec((tm_eff, d), lambda i, k: (i, 0)),    # x (residual rows)
            ],
            out_specs=pl.BlockSpec((tm_eff, d), lambda i, k: (i, 0)),
            scratch_shapes=[pltpu.VMEM((tm_eff, d), jnp.float32)],
        ),
        compiler_params=params,
        cost_estimate=cost,
    )(x2, w_bf, b2, x2)
    return out.reshape(orig_shape)


class Residual:
    """JAX/Pallas counterpart of the PyTorch `Residual` wrapper: fn(x) + x.

    `fn` stays an arbitrary JAX callable.  `use_pallas_add=True` (default
    here, since the add is the kernel under test) runs the lane-dense Pallas
    add; review note: in a larger program, `use_pallas_add=False` (plain JAX
    `fn(x) + x`) lets XLA fuse the add into fn's epilogue and removes one HBM
    round-trip — and when fn's tail is a Linear, prefer `residual_linear`.
    """

    def __init__(self, fn, *, use_pallas_add=True):
        self.fn = fn
        self.use_pallas_add = use_pallas_add

    def __call__(self, x, **kwargs):
        fx = self.fn(x, **kwargs)
        if self.use_pallas_add:
            return residual_add(fx, x)
        return fx + x


if __name__ == "__main__":
    key = jax.random.PRNGKey(0)
    k_x, k_w, k_b, k_x2, k_w2, k_b2 = jax.random.split(key, 6)

    # Small ViT3D-like shapes; D is a multiple of 128 so the fused linear gets
    # lane-dense stores and full MXU rows (review feedback).
    B, N, D = 2, 8, 128
    x = jax.random.normal(k_x, (B, N, D), dtype=jnp.float32)
    w = jax.random.normal(k_w, (D, D), dtype=jnp.float32) * 0.02
    b = jax.random.normal(k_b, (D,), dtype=jnp.float32) * 0.02

    fn = lambda t: jnp.einsum("bnd,de->bne", t, w) + b
    ref = fn(x) + x

    # Path A: generic Residual wrapper (fn in JAX, residual add in Pallas).
    out_a = jax.block_until_ready(Residual(fn)(x))
    assert out_a.shape == x.shape and out_a.dtype == x.dtype
    assert jnp.allclose(out_a, ref, atol=1e-5, rtol=1e-5)

    # Path B: fused Residual(Linear), weight-resident bf16 MXU kernel.
    out_b = jax.block_until_ready(residual_linear(x, w, b))
    assert out_b.shape == x.shape and out_b.dtype == x.dtype
    # bf16 MXU operands (f32 accumulation) -> looser tolerance.
    assert jnp.allclose(out_b, ref, atol=3e-2, rtol=3e-2)

    # Path C: K-tiled variant (used automatically for very large D on v7x);
    # forced here at small D=256 / tk=128 to exercise the accumulator pipeline.
    D2 = 256
    x_c = jax.random.normal(k_x2, (B, N, D2), dtype=jnp.float32)
    w_c = jax.random.normal(k_w2, (D2, D2), dtype=jnp.float32) * 0.02
    b_c = jax.random.normal(k_b2, (D2,), dtype=jnp.float32) * 0.02
    ref_c = jnp.einsum("bnd,de->bne", x_c, w_c) + b_c + x_c
    out_c = jax.block_until_ready(
        residual_linear(x_c, w_c, b_c, weight_resident_max_bytes=0, tk=128))
    assert out_c.shape == x_c.shape and out_c.dtype == x_c.dtype
    assert jnp.allclose(out_c, ref_c, atol=3e-2, rtol=3e-2)

    print("KERNEL_OK")
</pallas_src>

<mosaic_0001>
module attributes {stable_mosaic.version = 11 : i64} {
  func.func @_residual_add_kernel(%arg0: i32, %arg1: memref<1x2048xf32, #tpu.memory_space<vmem>>, %arg2: memref<1x2048xf32, #tpu.memory_space<vmem>>, %arg3: memref<1x2048xf32, #tpu.memory_space<vmem>>) attributes {dimension_semantics = [#tpu.dimension_semantics<parallel>], iteration_bounds = array<i64: 1>, scalar_prefetch = 0 : i64, scratch_operands = 0 : i64, tpu.core_type = #tpu.core_type<tc>, window_params = [{transform_indices = @transform_0, window_bounds = array<i64: 1, 2048>}, {transform_indices = @transform_1, window_bounds = array<i64: 1, 2048>}, {transform_indices = @transform_2, window_bounds = array<i64: 1, 2048>}]} {
    %c0 = arith.constant 0 : index
    %c0_0 = arith.constant 0 : index
    %0 = vector.load %arg1[%c0, %c0_0] : memref<1x2048xf32, #tpu.memory_space<vmem>>, vector<1x2048xf32>
    %c0_1 = arith.constant 0 : index
    %c0_2 = arith.constant 0 : index
    %1 = vector.load %arg2[%c0_1, %c0_2] : memref<1x2048xf32, #tpu.memory_space<vmem>>, vector<1x2048xf32>
    %2 = arith.addf %0, %1 : vector<1x2048xf32>
    %c0_3 = arith.constant 0 : index
    %c0_4 = arith.constant 0 : index
    %3 = vector.load %arg3[%c0_3, %c0_4] : memref<1x2048xf32, #tpu.memory_space<vmem>>, vector<1x2048xf32>
    tpu.vector_store %arg3[%c0_3, %c0_4], %2 {strides = array<i32>} : memref<1x2048xf32, #tpu.memory_space<vmem>>, vector<1x2048xf32>,
    return
  }
  func.func @transform_0(%arg0: i32) -> (i32, i32) {
    %c0_i32 = arith.constant 0 : i32
    %c0_i32_0 = arith.constant 0 : i32
    return %arg0, %c0_i32 : i32, i32
  }
  func.func @transform_1(%arg0: i32) -> (i32, i32) {
    %c0_i32 = arith.constant 0 : i32
    %c0_i32_0 = arith.constant 0 : i32
    return %arg0, %c0_i32 : i32, i32
  }
  func.func @transform_2(%arg0: i32) -> (i32, i32) {
    %c0_i32 = arith.constant 0 : i32
    %c0_i32_0 = arith.constant 0 : i32
    return %arg0, %c0_i32 : i32, i32
  }
}

</mosaic_0001>

<llo_original>
// kernel: tpu_custom_call.1
$region0: #{tpu_custom_call.1}
  #allocation0 [shape = 'u32[]', space=smem, size = 0x4, offset = 0x4, fixed_abs, tag = 'smem constant byte address 0x4 - core index']
  #allocation1 [shape = 'u32[144,128]{1,0:T(1,128)}', space=vmem, size = 0x12000, scoped, tag = 'internal scratch']
  %s0 = inlined_call_operand.hbm [shape: f32[1,2048], index: 0, kind: input, shape index: {}, may-alias: {0,2}]
  %s1 = inlined_call_operand.vmem [shape: f32[1,2048], index: 1, kind: input, shape index: {}]
  %s2 = inlined_call_operand.hbm [shape: f32[1,2048], index: 2, kind: output, shape index: {}, may-alias: {0,2}]
  %s3 = sld [smem:[#allocation0]]
  $region22: #{tpu_custom_call.1} parent=0
    _
  %s5 = ssub.s32 1, %s3
  %s6 = scalar_select 0, %s5, %s3
  $region1: #{tpu_custom_call.1} parent=0
    #allocation2 [shape = 'u8[8192]{0}', space=vmem, size = 0x2000, scoped, tag = 'input window, operand 0, single buffered']
    #allocation3 [shape = 's32[1]{0}', space=sflag, size = 0x4, scoped, tag = 'scoped memory for tpu_custom_call.1']
    #allocation4 [shape = 's32[1]{0}', space=sflag, size = 0x4, scoped, tag = 'scoped memory for tpu_custom_call.1']
    #allocation5 [shape = 'u8[8192]{0}', space=vmem, size = 0x2000, scoped, tag = 'output window, operand 0, single buffered']
    %7 = vsyncpa [#allocation3], 0
    %8 = vsyncpa [#allocation4], 0
    // Predicated region
    $region2: #{tpu_custom_call.1} parent=1 // pred_check
      _
    $region3: #{tpu_custom_call.1} parent=1 // pred_check_branch
      %10 = sbr.rel (0) target = $region5
    $region4: #{tpu_custom_call.1} parent=1 // pred_region
      %s12 = ssub.s32 256, 256
      %13 = vsyncadd [#allocation3], %s12
      %s15 = sshll.u32 [#allocation2], 4
      %s16 = int_to_ptr.vmem [resolvable:$true] %s15
      %18 = dma.hbm_to_vmem [thread:$0]  %s0, 256, %s16, [#allocation3]
    $region5: #{tpu_custom_call.1} parent=1 // pred_fallthru
      _
    // Predicated region
    $region6: #{tpu_custom_call.1} parent=1 // pred_check
      _
    $region7: #{tpu_custom_call.1} parent=1 // pred_check_branch
      %20 = sbr.rel (0) target = $region9
    $region8: #{tpu_custom_call.1} parent=1 // pred_region
      _
    $region9: #{tpu_custom_call.1} parent=1 // pred_fallthru
      _
    // Predicated region
    $region10: #{tpu_custom_call.1} parent=1 // pred_check
      _
    $region11: #{tpu_custom_call.1} parent=1 // pred_check_branch
      %22 = sbr.rel (0) target = $region13
    $region12: #{tpu_custom_call.1} parent=1 // pred_region
      %23 = dma.done [#allocation3], 256
    $region13: #{tpu_custom_call.1} parent=1 // pred_fallthru
      _
    %v24 = vld [vmem:[#allocation2] sm:$0xff]
    %v25 = vld [vmem:[#allocation2 + $0x8] sm:$0xff]
    %v26 = vld [vmem:[%s1] sm:$0xff]
    %v27 = vld [vmem:[%s1 + $0x8] sm:$0xff]
    %v28 = vadd.f32 %v24, %v26
    %v29 = vadd.f32 %v25, %v27
    %30 = vst [vmem:[#allocation5] sm:$0xff] %v28
    %31 = vst [vmem:[#allocation5 + $0x8] sm:$0xff] %v29
    // Predicated region
    $region14: #{tpu_custom_call.1} parent=1 // pred_check
      _
    $region15: #{tpu_custom_call.1} parent=1 // pred_check_branch
      %33 = sbr.rel (0) target = $region17
    $region16: #{tpu_custom_call.1} parent=1 // pred_region
      %s35 = ssub.s32 256, 256
      %36 = vsyncadd [#allocation4], %s35
      %s38 = sshll.u32 [#allocation5], 4
      %s39 = int_to_ptr.vmem [resolvable:$true] %s38
      %41 = dma.vmem_to_hbm [thread:$0]  %s39, 256, %s2, [#allocation4]
    $region17: #{tpu_custom_call.1} parent=1 // pred_fallthru
      _
    // Predicated region
    $region18: #{tpu_custom_call.1} parent=1 // pred_check
      _
    $region19: #{tpu_custom_call.1} parent=1 // pred_check_branch
      %43 = sbr.rel (0) target = $region21
    $region20: #{tpu_custom_call.1} parent=1 // pred_region
      %44 = dma.done [#allocation4], 256
    $region21: #{tpu_custom_call.1} parent=1 // pred_fallthru
      _
    %45 = vsyncpa [#allocation3], 1
    %46 = vsyncpa [#allocation4], 1

</llo_original>
